<compile_context>
chip_gen: v6e
topology: v6e:2x2x1
jax: 0.10.0
libtpu: 0.0.40
codegen_flags: <defaults>
</compile_context>

<pallas_src>
import jax
import jax.numpy as jnp
from jax.experimental import pallas as pl
from jax.experimental.pallas import tpu as pltpu

IN_FEATURES = 32
OUT_FEATURES = 64

PACK = 4                        # logical rows packed per lane-dense row
IN_P = PACK * IN_FEATURES       # 128  (one full lane width on input)
OUT_P = PACK * OUT_FEATURES     # 256  (two full lane widths on output)


def linear_hardswish_kernel(x_ref, w_ref, b_ref, o_ref):
    # x_ref: (TB, 128)  w_ref: (128, 256)  b_ref: (1, 256) f32  o_ref: (TB, 256)
    # MXU matmul with f32 accumulation; bias add + hardswish epilogue in f32.
    l1 = jnp.dot(x_ref[...], w_ref[...], preferred_element_type=jnp.float32)
    l1 = l1 + b_ref[...]
    act = jnp.clip(l1 + 3.0, 0.0, 6.0)          # hardtanh(l1 + 3, 0, 6)
    o_ref[...] = (l1 * act * (1.0 / 6.0)).astype(o_ref.dtype)


def pack_params(w, b, io_dtype=jnp.float32):
    """Build the block-diagonal packed weight / tiled bias once (hoisted).

    w: (32, 64) f32 = transposed nn.Linear weight (so y = x @ w + b),
    b: (64,)   f32.  io_dtype controls the dtype fed to the MXU (f32 or bf16).
    """
    # (128, 256) block-diagonal: 4 copies of w on the diagonal.
    w_packed = jnp.kron(jnp.eye(PACK, dtype=w.dtype), w).astype(io_dtype)
    # Bias stays f32 so the epilogue accumulates in f32 regardless of io dtype.
    b_packed = jnp.tile(b.astype(jnp.float32), PACK).reshape(1, OUT_P)
    return w_packed, b_packed


def _pick_tile(bp, tile_rows):
    """Pick a batch tile (packed rows): multiple of 8, and >=2 grid steps when
    possible so v7x's two TensorCores both get work on the 'parallel' axis."""
    if bp <= 8:
        return bp                           # block == full array dim -> legal
    tb = min(int(tile_rows), bp)
    tb = max(8, (tb // 8) * 8)              # multiple of 8 (sublane constraint)
    if -(-bp // tb) < 2:                    # would be a single grid step
        tb = max(8, ((-(-bp // 2) + 7) // 8) * 8)
    return tb


def _run_packed(x_mult, w_packed, b_packed, out_dtype, tile_rows):
    """x_mult: (B, 32) with B a multiple of PACK."""
    B = x_mult.shape[0]
    bp = B // PACK
    # Free row-major reinterpretation: (B, 32) -> (B/4, 128).
    x_packed = x_mult.reshape(bp, IN_P)
    if w_packed.dtype != x_packed.dtype:
        w_packed = w_packed.astype(x_packed.dtype)

    tb = _pick_tile(bp, tile_rows)
    grid = (pl.cdiv(bp, tb),)

    # Raise the scoped VMEM limit only if a user-chosen tile needs it
    # (v5e default is 16 MiB; the default tile here uses ~6.5 MiB).
    itemsize = jnp.dtype(x_packed.dtype).itemsize
    est = (2 * tb * (IN_P * itemsize + OUT_P * jnp.dtype(out_dtype).itemsize)
           + IN_P * OUT_P * itemsize + OUT_P * 4)
    extra = {}
    if est > (14 << 20):
        extra["vmem_limit_bytes"] = min(int(est * 3 // 2), 48 << 20)

    out_packed = pl.pallas_call(
        linear_hardswish_kernel,
        out_shape=jax.ShapeDtypeStruct((bp, OUT_P), out_dtype),
        grid=grid,
        in_specs=[
            pl.BlockSpec((tb, IN_P), lambda i: (i, 0)),
            pl.BlockSpec((IN_P, OUT_P), lambda i: (0, 0)),   # VMEM-resident
            pl.BlockSpec((1, OUT_P), lambda i: (0, 0)),      # VMEM-resident
        ],
        out_specs=pl.BlockSpec((tb, OUT_P), lambda i: (i, 0)),
        compiler_params=pltpu.CompilerParams(
            dimension_semantics=("parallel",), **extra),
    )(x_packed, w_packed, b_packed)

    # (B/4, 256) -> (B, 64) row-major (free reinterpretation).
    return out_packed.reshape(B, OUT_FEATURES)


def linear_hardswish_packed(x, w_packed, b_packed, *, out_dtype=None,
                            tile_rows=2048):
    """x: (B, 32); w_packed/b_packed from pack_params (hoisted)."""
    B = x.shape[0]
    out_dtype = x.dtype if out_dtype is None else jnp.dtype(out_dtype)
    rem = B % PACK
    if rem == 0:
        return _run_packed(x, w_packed, b_packed, out_dtype, tile_rows)
    # Only the <= 3 tail rows get padded/copied; the bulk of x is untouched.
    B_main = B - rem
    tail = jnp.pad(x[B_main:], ((0, PACK - rem), (0, 0)))
    out_tail = _run_packed(tail, w_packed, b_packed, out_dtype, tile_rows)[:rem]
    if B_main == 0:
        return out_tail
    out_main = _run_packed(x[:B_main], w_packed, b_packed, out_dtype, tile_rows)
    return jnp.concatenate([out_main, out_tail], axis=0)


def linear_hardswish(x, w, b, *, out_dtype=None, tile_rows=2048):
    """Convenience wrapper: packs parameters on the fly."""
    w_packed, b_packed = pack_params(w, b, io_dtype=x.dtype)
    return linear_hardswish_packed(x, w_packed, b_packed,
                                   out_dtype=out_dtype, tile_rows=tile_rows)


def _reference(x, w, b):
    l1 = x @ w + b
    return l1 * jnp.clip(l1 + 3.0, 0.0, 6.0) / 6.0


if __name__ == "__main__":
    key = jax.random.PRNGKey(0)
    k_x, k_w, k_b = jax.random.split(key, 3)

    # Deterministic synthetic parameters (shapes match nn.Linear(32, 64)).
    # PyTorch weight is (OUT, IN); store transposed as (IN, OUT) for x @ W.
    bound = 1.0 / (IN_FEATURES ** 0.5)
    w = jax.random.uniform(
        k_w, (IN_FEATURES, OUT_FEATURES), jnp.float32, -bound, bound)
    b = jax.random.uniform(k_b, (OUT_FEATURES,), jnp.float32, -bound, bound)

    # Pack once (hoisted out of the per-call path), f32 I/O path.
    w_p32, b_p32 = pack_params(w, b, io_dtype=jnp.float32)

    # Main check, B = 2.
    B = 2
    x = jax.random.normal(k_x, (B, IN_FEATURES), jnp.float32)
    out = linear_hardswish_packed(x, w_p32, b_p32)
    jax.block_until_ready(out)
    assert out.shape == (B, OUT_FEATURES)
    assert jnp.allclose(out, _reference(x, w, b), atol=1e-5, rtol=1e-5)

    # Odd / ragged batches: spec's (1, 32), a tail-only path, a main+tail path.
    for Bo in (1, 5, 11):
        xo = jax.random.normal(jax.random.PRNGKey(Bo), (Bo, IN_FEATURES),
                               jnp.float32)
        oo = linear_hardswish_packed(xo, w_p32, b_p32)
        jax.block_until_ready(oo)
        assert oo.shape == (Bo, OUT_FEATURES)
        assert jnp.allclose(oo, _reference(xo, w, b), atol=1e-5, rtol=1e-5)

    # bf16 I/O path (halves HBM traffic); accumulation + epilogue stay f32.
    w_pbf, b_pbf = pack_params(w, b, io_dtype=jnp.bfloat16)
    xb = jax.random.normal(jax.random.PRNGKey(7), (64, IN_FEATURES),
                           jnp.float32)
    ob = linear_hardswish_packed(xb.astype(jnp.bfloat16), w_pbf, b_pbf)
    jax.block_until_ready(ob)
    assert ob.shape == (64, OUT_FEATURES) and ob.dtype == jnp.bfloat16
    assert jnp.allclose(ob.astype(jnp.float32), _reference(xb, w, b),
                        atol=5e-2, rtol=5e-2)

    print("KERNEL_OK")
</pallas_src>

<mosaic_0001>
module attributes {stable_mosaic.version = 11 : i64} {
  func.func @linear_hardswish_kernel(%arg0: i32, %arg1: memref<1x128xf32, #tpu.memory_space<vmem>>, %arg2: memref<128x256xf32, #tpu.memory_space<vmem>>, %arg3: memref<1x256xf32, #tpu.memory_space<vmem>>, %arg4: memref<1x256xf32, #tpu.memory_space<vmem>>) attributes {dimension_semantics = [#tpu.dimension_semantics<parallel>], iteration_bounds = array<i64: 1>, scalar_prefetch = 0 : i64, scratch_operands = 0 : i64, tpu.core_type = #tpu.core_type<tc>, window_params = [{transform_indices = @transform_0, window_bounds = array<i64: 1, 128>}, {pipeline_mode = #tpu.pipeline_mode<synchronous>, transform_indices = @transform_1, window_bounds = array<i64: 128, 256>}, {pipeline_mode = #tpu.pipeline_mode<synchronous>, transform_indices = @transform_2, window_bounds = array<i64: 1, 256>}, {transform_indices = @transform_3, window_bounds = array<i64: 1, 256>}]} {
    %c0 = arith.constant 0 : index
    %c0_0 = arith.constant 0 : index
    %0 = vector.load %arg1[%c0, %c0_0] : memref<1x128xf32, #tpu.memory_space<vmem>>, vector<1x128xf32>
    %c0_1 = arith.constant 0 : index
    %c0_2 = arith.constant 0 : index
    %1 = vector.load %arg2[%c0_1, %c0_2] : memref<128x256xf32, #tpu.memory_space<vmem>>, vector<128x256xf32>
    %cst = arith.constant dense<0.000000e+00> : vector<1x256xf32>
    %2 = tpu.matmul %0, %1, %cst {dimension_numbers = #tpu.dot_dimension_numbers<[1], [0], [0], [1], [0, 0, 1, 1], [], []>} : vector<1x128xf32>, vector<128x256xf32>, vector<1x256xf32> -> vector<1x256xf32>
    %c0_3 = arith.constant 0 : index
    %c0_4 = arith.constant 0 : index
    %3 = vector.load %arg3[%c0_3, %c0_4] : memref<1x256xf32, #tpu.memory_space<vmem>>, vector<1x256xf32>
    %4 = arith.addf %2, %3 : vector<1x256xf32>
    %cst_5 = arith.constant 3.000000e+00 : f32
    %5 = vector.broadcast %cst_5 : f32 to vector<1x256xf32>
    %6 = arith.addf %4, %5 : vector<1x256xf32>
    %cst_6 = arith.constant 0.000000e+00 : f32
    %cst_7 = arith.constant 6.000000e+00 : f32
    %7 = vector.broadcast %cst_6 : f32 to vector<1x256xf32>
    %8 = arith.maximumf %7, %6 : vector<1x256xf32>
    %9 = vector.broadcast %cst_7 : f32 to vector<1x256xf32>
    %10 = arith.minimumf %9, %8 : vector<1x256xf32>
    %11 = arith.mulf %4, %10 : vector<1x256xf32>
    %cst_8 = arith.constant 0.166666672 : f32
    %12 = vector.broadcast %cst_8 : f32 to vector<1x256xf32>
    %13 = arith.mulf %11, %12 : vector<1x256xf32>
    %c0_9 = arith.constant 0 : index
    %c0_10 = arith.constant 0 : index
    %14 = vector.load %arg4[%c0_9, %c0_10] : memref<1x256xf32, #tpu.memory_space<vmem>>, vector<1x256xf32>
    tpu.vector_store %arg4[%c0_9, %c0_10], %13 {strides = array<i32>} : memref<1x256xf32, #tpu.memory_space<vmem>>, vector<1x256xf32>,
    return
  }
  func.func @transform_0(%arg0: i32) -> (i32, i32) {
    %c0_i32 = arith.constant 0 : i32
    %c0_i32_0 = arith.constant 0 : i32
    return %arg0, %c0_i32 : i32, i32
  }
  func.func @transform_1(%arg0: i32) -> (i32, i32) {
    %c0_i32 = arith.constant 0 : i32
    %c0_i32_0 = arith.constant 0 : i32
    %c0_i32_1 = arith.constant 0 : i32
    return %c0_i32, %c0_i32_0 : i32, i32
  }
  func.func @transform_2(%arg0: i32) -> (i32, i32) {
    %c0_i32 = arith.constant 0 : i32
    %c0_i32_0 = arith.constant 0 : i32
    %c0_i32_1 = arith.constant 0 : i32
    return %c0_i32, %c0_i32_0 : i32, i32
  }
  func.func @transform_3(%arg0: i32) -> (i32, i32) {
    %c0_i32 = arith.constant 0 : i32
    %c0_i32_0 = arith.constant 0 : i32
    return %arg0, %c0_i32 : i32, i32
  }
}

</mosaic_0001>

<llo_original>
// kernel: tpu_custom_call.1
$region0: #{tpu_custom_call.1}
  #allocation0 [shape = 'u32[]', space=smem, size = 0x4, offset = 0x4, fixed_abs, tag = 'smem constant byte address 0x4 - core index']
  #allocation1 [shape = 'u32[144,128]{1,0:T(1,128)}', space=vmem, size = 0x12000, scoped, tag = 'internal scratch']
  %s0 = inlined_call_operand.hbm [shape: f32[1,128], index: 0, kind: input, shape index: {}]
  %s1 = inlined_call_operand.hbm [shape: f32[128,256], index: 1, kind: input, shape index: {}]
  %s2 = inlined_call_operand.vmem [shape: f32[1,256], index: 2, kind: input, shape index: {}]
  %s3 = inlined_call_operand.hbm [shape: f32[1,256], index: 3, kind: output, shape index: {}]
  %s4 = sld [smem:[#allocation0]]
  $region30: #{tpu_custom_call.1} parent=0
    _
  %s6 = ssub.s32 1, %s4
  %s7 = scalar_select 0, %s6, %s4
  $region1: #{tpu_custom_call.1} parent=0
    #allocation2 [shape = 'u8[512]{0}', space=vmem, size = 0x400, scoped, tag = 'input window, operand 0, single buffered']
    #allocation3 [shape = 's32[1]{0}', space=sflag, size = 0x4, scoped, tag = 'scoped memory for tpu_custom_call.1']
    #allocation4 [shape = 's32[1]{0}', space=sflag, size = 0x4, scoped, tag = 'scoped memory for tpu_custom_call.1']
    #allocation5 [shape = 'u8[131072]{0}', space=vmem, size = 0x20000, scoped, tag = 'input window, operand 1, single buffered']
    #allocation6 [shape = 's32[1]{0}', space=sflag, size = 0x4, scoped, tag = 'scoped memory for tpu_custom_call.1']
    #allocation7 [shape = 'u8[1024]{0}', space=vmem, size = 0x400, scoped, tag = 'output window, operand 0, single buffered']
    %8 = vsyncpa [#allocation3], 0
    %9 = vsyncpa [#allocation6], 0
    %10 = vsyncpa [#allocation4], 0
    // Predicated region
    $region2: #{tpu_custom_call.1} parent=1 // pred_check
      _
    $region3: #{tpu_custom_call.1} parent=1 // pred_check_branch
      %12 = sbr.rel (0) target = $region5
    $region4: #{tpu_custom_call.1} parent=1 // pred_region
      %s14 = ssub.s32 16, 16
      %15 = vsyncadd [#allocation3], %s14
      %s17 = sshll.u32 [#allocation2], 4
      %s18 = int_to_ptr.vmem [resolvable:$true] %s17
      %20 = dma.hbm_to_vmem [thread:$0]  %s0, 16, %s18, [#allocation3]
    $region5: #{tpu_custom_call.1} parent=1 // pred_fallthru
      _
    // Predicated region
    $region6: #{tpu_custom_call.1} parent=1 // pred_check
      _
    $region7: #{tpu_custom_call.1} parent=1 // pred_check_branch
      %22 = sbr.rel (0) target = $region9
    $region8: #{tpu_custom_call.1} parent=1 // pred_region
      %s24 = ssub.s32 4096, 4096
      %25 = vsyncadd [#allocation6], %s24
      %s26 = sshll.u32 [#allocation5], 4
      %s27 = int_to_ptr.vmem [resolvable:$true] %s26
      %32 = dma.hbm_to_vmem [thread:$0]  %s1, 4096, %s27, [#allocation6], 256, 256, 16
    $region9: #{tpu_custom_call.1} parent=1 // pred_fallthru
      _
    // Predicated region
    $region10: #{tpu_custom_call.1} parent=1 // pred_check
      _
    $region11: #{tpu_custom_call.1} parent=1 // pred_check_branch
      %34 = sbr.rel (0) target = $region13
    $region12: #{tpu_custom_call.1} parent=1 // pred_region
      _
    $region13: #{tpu_custom_call.1} parent=1 // pred_fallthru
      _
    // Predicated region
    $region14: #{tpu_custom_call.1} parent=1 // pred_check
      _
    $region15: #{tpu_custom_call.1} parent=1 // pred_check_branch
      %36 = sbr.rel (0) target = $region17
    $region16: #{tpu_custom_call.1} parent=1 // pred_region
      %37 = dma.done [#allocation3], 16
    $region17: #{tpu_custom_call.1} parent=1 // pred_fallthru
      _
    // Predicated region
    $region18: #{tpu_custom_call.1} parent=1 // pred_check
      _
    $region19: #{tpu_custom_call.1} parent=1 // pred_check_branch
      %39 = sbr.rel (0) target = $region21
    $region20: #{tpu_custom_call.1} parent=1 // pred_region
      %40 = dma.done [#allocation6], 4096
    $region21: #{tpu_custom_call.1} parent=1 // pred_fallthru
      _
    %v41 = vld [vmem:[#allocation2] sm:$0x1]
    %v42 = vld [vmem:[#allocation5] sm:$0xff]
    %v43 = vld [vmem:[#allocation5 + $0x8] sm:$0xff]
    %v44 = vld [vmem:[#allocation5 + $0x10] sm:$0xff]
    %v45 = vld [vmem:[#allocation5 + $0x18] sm:$0xff]
    %v46 = vld [vmem:[#allocation5 + $0x20] sm:$0xff]
    %v47 = vld [vmem:[#allocation5 + $0x28] sm:$0xff]
    %v48 = vld [vmem:[#allocation5 + $0x30] sm:$0xff]
    %v49 = vld [vmem:[#allocation5 + $0x38] sm:$0xff]
    %v50 = vld [vmem:[#allocation5 + $0x40] sm:$0xff]
    %v51 = vld [vmem:[#allocation5 + $0x48] sm:$0xff]
    %v52 = vld [vmem:[#allocation5 + $0x50] sm:$0xff]
    %v53 = vld [vmem:[#allocation5 + $0x58] sm:$0xff]
    %v54 = vld [vmem:[#allocation5 + $0x60] sm:$0xff]
    %v55 = vld [vmem:[#allocation5 + $0x68] sm:$0xff]
    %v56 = vld [vmem:[#allocation5 + $0x70] sm:$0xff]
    %v57 = vld [vmem:[#allocation5 + $0x78] sm:$0xff]
    %v58 = vld [vmem:[#allocation5 + $0x80] sm:$0xff]
    %v59 = vld [vmem:[#allocation5 + $0x88] sm:$0xff]
    %v60 = vld [vmem:[#allocation5 + $0x90] sm:$0xff]
    %v61 = vld [vmem:[#allocation5 + $0x98] sm:$0xff]
    %v62 = vld [vmem:[#allocation5 + $0xa0] sm:$0xff]
    %v63 = vld [vmem:[#allocation5 + $0xa8] sm:$0xff]
    %v64 = vld [vmem:[#allocation5 + $0xb0] sm:$0xff]
    %v65 = vld [vmem:[#allocation5 + $0xb8] sm:$0xff]
    %v66 = vld [vmem:[#allocation5 + $0xc0] sm:$0xff]
    %v67 = vld [vmem:[#allocation5 + $0xc8] sm:$0xff]
    %v68 = vld [vmem:[#allocation5 + $0xd0] sm:$0xff]
    %v69 = vld [vmem:[#allocation5 + $0xd8] sm:$0xff]
    %v70 = vld [vmem:[#allocation5 + $0xe0] sm:$0xff]
    %v71 = vld [vmem:[#allocation5 + $0xe8] sm:$0xff]
    %v72 = vld [vmem:[#allocation5 + $0xf0] sm:$0xff]
    %v73 = vld [vmem:[#allocation5 + $0xf8] sm:$0xff]
    %v74 = vld [vmem:[%s2] sm:$0x3]
    %v76 = vlaneseq
    %v77 = vshrl.u32 %v76, 7
    %v78 = vsub.s32 0, %v77
    %v79 = vrot.slane %v74, %v78
    %v80 = vlaneseq
    %v81 = vshrl.u32 %v80, 7
    %v82 = vsub.s32 1, %v81
    %v83 = vrot.slane %v74, %v82
    %86 = vmatprep.subr.mxu0 %v73
    %87 = vmatpush1.msra.mxu0 %v72
    %88 = vmatprep.subr.mxu0 %v71
    %89 = vmatpush1.msra.mxu0 %v70
    %90 = vmatprep.subr.mxu0 %v69
    %91 = vmatpush1.msra.mxu0 %v68
    %92 = vmatprep.subr.mxu0 %v67
    %93 = vmatpush1.msra.mxu0 %v66
    %94 = vmatprep.subr.mxu0 %v65
    %95 = vmatpush1.msra.mxu0 %v64
    %96 = vmatprep.subr.mxu0 %v63
    %97 = vmatpush1.msra.mxu0 %v62
    %98 = vmatprep.subr.mxu0 %v61
    %99 = vmatpush1.msra.mxu0 %v60
    %100 = vmatprep.subr.mxu0 %v59
    %101 = vmatpush1.msra.mxu0 %v58
    %102 = vmatprep.subr.mxu0 %v57
    %103 = vmatpush1.msra.mxu0 %v56
    %104 = vmatprep.subr.mxu0 %v55
    %105 = vmatpush1.msra.mxu0 %v54
    %106 = vmatprep.subr.mxu0 %v53
    %107 = vmatpush1.msra.mxu0 %v52
    %108 = vmatprep.subr.mxu0 %v51
    %109 = vmatpush1.msra.mxu0 %v50
    %110 = vmatprep.subr.mxu0 %v49
    %111 = vmatpush1.msra.mxu0 %v48
    %112 = vmatprep.subr.mxu0 %v47
    %113 = vmatpush1.msra.mxu0 %v46
    %114 = vmatprep.subr.mxu0 %v45
    %115 = vmatpush1.msra.mxu0 %v44
    %116 = vmatprep.subr.mxu0 %v43
    %117 = vmatpush1.msra.mxu0 %v42
    %118 = vmatprep.subr.mxu0 0.0
    %119 = vmatpush2.msra.mxu0 0.0
    %120 = vmatprep.subr.mxu0 0.0
    %121 = vmatpush2.msra.mxu0 0.0
    %122 = vmatprep.subr.mxu0 0.0
    %123 = vmatpush2.msra.mxu0 0.0
    %124 = vmatprep.subr.mxu0 0.0
    %125 = vmatpush2.msra.mxu0 0.0
    %126 = vmatprep.subr.mxu0 0.0
    %127 = vmatpush2.msra.mxu0 0.0
    %128 = vmatprep.subr.mxu0 0.0
    %129 = vmatpush2.msra.mxu0 0.0
    %130 = vmatprep.subr.mxu0 0.0
    %131 = vmatpush2.msra.mxu0 0.0
    %132 = vmatprep.subr.mxu0 0.0
    %133 = vmatpush2.msra.mxu0 0.0
    %134 = vmatprep.subr.mxu0 0.0
    %135 = vmatpush2.msra.mxu0 0.0
    %136 = vmatprep.subr.mxu0 0.0
    %137 = vmatpush2.msra.mxu0 0.0
    %138 = vmatprep.subr.mxu0 0.0
    %139 = vmatpush2.msra.mxu0 0.0
    %140 = vmatprep.subr.mxu0 0.0
    %141 = vmatpush2.msra.mxu0 0.0
    %142 = vmatprep.subr.mxu0 0.0
    %143 = vmatpush2.msra.mxu0 0.0
    %144 = vmatprep.subr.mxu0 0.0
    %145 = vmatpush2.msra.mxu0 0.0
    %146 = vmatprep.subr.mxu0 0.0
    %147 = vmatpush2.msra.mxu0 0.0
    %148 = vmatprep.subr.mxu0 0.0
    %149 = vmatpush2.msra.mxu0 0.0
    %150 = vmatprep.mubr.f32.mxu0 0.0
    %151 = vmatmul.mubr.f32.gmra.mxu0 %v41
    %v152 = vpop.f32.mrf.mxu0
    %v153 = vadd.f32 %v79, %v152
    %v154 = vpop.f32.mrf.mxu0
    %v155 = vadd.f32 %v83, %v154
    %156 = vdwg.mxu0
    %v157 = vadd.f32 %v153, 3.0
    %v158 = vadd.f32 %v155, 3.0
    %v159 = vmax.f32 %v157, 0.0
    %v160 = vmax.f32 %v158, 0.0
    %v161 = vmin.f32 %v159, 6.0
    %v162 = vmin.f32 %v160, 6.0
    %v163 = vmul.f32 %v153, %v161
    %v164 = vmul.f32 %v155, %v162
    %v165 = vmul.f32 %v163, 0.16666667
    %v166 = vmul.f32 %v164, 0.16666667
    %v169 = vcombine.low %v165, %v166
    %v171 = vunpack.c.l.s4 1966171168
    %v172 = vunpack.c.0.s8 %v171
    %v173 = vlaneseq
    %v174 = vshrl.u32 %v173, 7
    %v175 = vsub.s32 %v172, %v174
    %v176 = vrot.slane %v169, %v175
    %v178 = vunpack.c.l.s4 1966171168
    %v179 = vunpack.c.0.s8 %v178
    %v180 = vlaneseq
    %v181 = vshrl.u32 %v180, 7
    %v182 = vsub.s32 %v179, %v181
    %v183 = vrot.slane %v176, %v182
    %v185 = vlaneseq
    %vm186 = vcmp.ge.s32.totalorder %v185, 0
    %vm187 = vcmp.lt.s32.totalorder %v185, 256
    %vm188 = vmand %vm186, %vm187
    %189 = vst.msk [vmem:[#allocation7] sm:$0x3] %vm188, %v183
    // Predicated region
    $region22: #{tpu_custom_call.1} parent=1 // pred_check
      _
    $region23: #{tpu_custom_call.1} parent=1 // pred_check_branch
      %191 = sbr.rel (0) target = $region25
    $region24: #{tpu_custom_call.1} parent=1 // pred_region
      %s193 = ssub.s32 32, 32
      %194 = vsyncadd [#allocation4], %s193
      %s196 = sshll.u32 [#allocation7], 4
      %s197 = int_to_ptr.vmem [resolvable:$true] %s196
      %199 = dma.vmem_to_hbm [thread:$0]  %s197, 32, %s3, [#allocation4]
    $region25: #{tpu_custom_call.1} parent=1 // pred_fallthru
      _
    // Predicated region
    $region26: #{tpu_custom_call.1} parent=1 // pred_check
      _
    $region27: #{tpu_custom_call.1} parent=1 // pred_check_branch
      %201 = sbr.rel (0) target = $region29
    $region28: #{tpu_custom_call.1} parent=1 // pred_region
      %202 = dma.done [#allocation4], 32
    $region29: #{tpu_custom_call.1} parent=1 // pred_fallthru
      _
    %203 = vsyncpa [#allocation3], 1
    %204 = vsyncpa [#allocation6], 1
    %205 = vsyncpa [#allocation4], 1

</llo_original>
